<compile_context>
chip_gen: v7x
topology: tpu7x:2x2x1
jax: 0.10.0
libtpu: 0.0.40
codegen_flags: <defaults>
</compile_context>

<pallas_src>
import math

import jax
import jax.numpy as jnp
from jax import lax
from jax.experimental import pallas as pl
from jax.experimental.pallas import tpu as pltpu

LATENT = 2
SOURCE = 6
ENC_HID = 256
DEC_HID = 256

LATENT_PAD = 8     # latent lanes padded to 8 (fused head output = mu|log_sigma = 16 lanes)
SRC_PAD = 8        # input features padded 6 -> 8; packed input slab is 16 lanes (x|eps)
OUT_PAD = 8        # packed output slab: recon[0:6] | kl[6] | 0
MAX_TILE_B = 256   # rows per grid step; VMEM footprint stays tiny on v5e/v6e/v7x


def _vae_kernel(xe_ref,                  # [TB, 16]  f32  (x lanes 0..7, eps lanes 8..15)
                w1_ref, b1_ref,          # encoder linear_in  [SRC_PAD, 256] bf16 / [1, 256] f32
                wh_ref, bh_ref,          # fused mu|log_sigma [256, 16] bf16      / [1, 16]  f32
                wdin_ref, bdin_ref,      # decoder linear_in  [LATENT_PAD, 256] bf16 / [1, 256] f32
                wfold_ref, bfold_ref,    # folded mid@out     [256, OUT_PAD] bf16 / [1, OUT_PAD] f32
                out_ref):                # [TB, OUT_PAD] f32
    xe = xe_ref[...]                                                   # [TB, 16] f32
    x = xe[:, :SRC_PAD].astype(jnp.bfloat16)                           # [TB, 8]
    eps = xe[:, SRC_PAD:]                                              # [TB, 8] f32 (lanes >= LATENT are 0)

    # ---------------- Encoder ----------------
    h = jnp.dot(x, w1_ref[...], preferred_element_type=jnp.float32) + b1_ref[...]
    h = jnp.maximum(h, 0.0)                                            # [TB, 256] f32

    head = jnp.dot(h.astype(jnp.bfloat16), wh_ref[...],
                   preferred_element_type=jnp.float32) + bh_ref[...]   # [TB, 16] f32
    mu = head[:, :LATENT_PAD]                                          # [TB, 8]
    log_sigma = head[:, LATENT_PAD:]                                   # [TB, 8]
    sigma = jnp.exp(log_sigma)                                         # f32 (EUP)

    z = mu + sigma * eps                                               # reparameterization

    # Per-row KL partial; mask the zero-padded latent columns (there mu = 0 and
    # sigma = 1 exactly, which would otherwise each contribute 0.5).
    lat_col = lax.broadcasted_iota(jnp.int32, mu.shape, 1)
    kl_terms = jnp.where(lat_col < LATENT,
                         sigma * sigma + mu * mu - log_sigma - 0.5, 0.0)
    kl_row = jnp.sum(kl_terms, axis=1, keepdims=True)                  # [TB, 1]

    # ---------------- Decoder ----------------
    d = jnp.dot(z.astype(jnp.bfloat16), wdin_ref[...],
                preferred_element_type=jnp.float32) + bdin_ref[...]
    d = jnp.maximum(d, 0.0)                                            # [TB, 256]
    # mid linear and out linear have no activation between them -> one folded affine
    y = jnp.dot(d.astype(jnp.bfloat16), wfold_ref[...],
                preferred_element_type=jnp.float32) + bfold_ref[...]   # [TB, 8]
    y = jax.nn.sigmoid(y)

    # Pack recon (cols 0..5) and KL partial (col 6) into one lane-dense slab.
    out_col = lax.broadcasted_iota(jnp.int32, y.shape, 1)
    out_ref[...] = jnp.where(out_col < SOURCE, y,
                             jnp.where(out_col == SOURCE, kl_row, 0.0))


def _round_up(n, m):
    return (n + m - 1) // m * m


def prepare_kernel_params(p):
    """Fold / fuse / pad the f32 nn.Linear-style params into kernel operands."""
    f32, bf16 = jnp.float32, jnp.bfloat16

    # encoder input layer: pad in-features 6 -> 8
    w1 = jnp.zeros((SRC_PAD, ENC_HID), f32).at[:SOURCE].set(p["w_in_e"]).astype(bf16)
    b1 = p["b_in_e"].astype(f32)

    # fused mu | log_sigma head, each out-dim padded 2 -> 8 (16 lanes total)
    wh = jnp.zeros((ENC_HID, 2 * LATENT_PAD), f32)
    wh = wh.at[:, :LATENT].set(p["w_mu"])
    wh = wh.at[:, LATENT_PAD:LATENT_PAD + LATENT].set(p["w_sig"])
    bh = jnp.zeros((1, 2 * LATENT_PAD), f32)
    bh = bh.at[:, :LATENT].set(p["b_mu"])
    bh = bh.at[:, LATENT_PAD:LATENT_PAD + LATENT].set(p["b_sig"])

    # decoder input layer: pad in-features 2 -> 8
    wdin = jnp.zeros((LATENT_PAD, DEC_HID), f32).at[:LATENT].set(p["w_in_d"]).astype(bf16)
    bdin = p["b_in_d"].astype(f32)

    # decoder mid + out fold (done in f32, then cast), out-features padded 6 -> 8
    w_fold = p["w_mid_d"] @ p["w_out_d"]                      # [256, 6]
    b_fold = p["b_mid_d"] @ p["w_out_d"] + p["b_out_d"]       # [1, 6]
    wfold = jnp.zeros((DEC_HID, OUT_PAD), f32).at[:, :SOURCE].set(w_fold).astype(bf16)
    bfold = jnp.zeros((1, OUT_PAD), f32).at[:, :SOURCE].set(b_fold)

    return dict(w1=w1, b1=b1, wh=wh.astype(bf16), bh=bh,
                wdin=wdin, bdin=bdin, wfold=wfold, bfold=bfold)


@jax.jit
def vae_forward(x, eps, kp):
    """x: [B, SOURCE] f32, eps: [B, LATENT] f32, kp: prepared kernel params."""
    B = x.shape[0]
    tile_b = min(MAX_TILE_B, _round_up(B, 8))
    b_pad = _round_up(B, tile_b)

    # Pack x and eps into one padded slab -> single input DMA stream per step.
    xe = jnp.zeros((b_pad, 2 * SRC_PAD), jnp.float32)
    xe = xe.at[:B, :SOURCE].set(x).at[:B, SRC_PAD:SRC_PAD + LATENT].set(eps)

    def resident(arr):
        return pl.BlockSpec(arr.shape, lambda i: (0, 0))

    packed = pl.pallas_call(
        _vae_kernel,
        grid=(b_pad // tile_b,),
        in_specs=[
            pl.BlockSpec((tile_b, 2 * SRC_PAD), lambda i: (i, 0)),   # x | eps
            resident(kp["w1"]), resident(kp["b1"]),
            resident(kp["wh"]), resident(kp["bh"]),
            resident(kp["wdin"]), resident(kp["bdin"]),
            resident(kp["wfold"]), resident(kp["bfold"]),
        ],
        out_specs=pl.BlockSpec((tile_b, OUT_PAD), lambda i: (i, 0)),  # recon | kl | 0
        out_shape=jax.ShapeDtypeStruct((b_pad, OUT_PAD), jnp.float32),
        compiler_params=pltpu.CompilerParams(
            dimension_semantics=("parallel",),
        ),
    )(xe, kp["w1"], kp["b1"], kp["wh"], kp["bh"],
      kp["wdin"], kp["bdin"], kp["wfold"], kp["bfold"])

    recon = packed[:B, :SOURCE]
    kl = jnp.sum(packed[:B, SOURCE])
    return recon, kl


def _linear_params(key, fan_in, fan_out):
    """PyTorch nn.Linear-style init; weight stored (in, out), bias (1, out)."""
    kw, kb = jax.random.split(key)
    bound = 1.0 / math.sqrt(fan_in)
    w = jax.random.uniform(kw, (fan_in, fan_out), jnp.float32, -bound, bound)
    b = jax.random.uniform(kb, (1, fan_out), jnp.float32, -bound, bound)
    return w, b


def init_params(key):
    keys = jax.random.split(key, 6)
    p = {}
    p["w_in_e"], p["b_in_e"] = _linear_params(keys[0], SOURCE, ENC_HID)
    p["w_mu"], p["b_mu"] = _linear_params(keys[1], ENC_HID, LATENT)
    p["w_sig"], p["b_sig"] = _linear_params(keys[2], ENC_HID, LATENT)
    p["w_in_d"], p["b_in_d"] = _linear_params(keys[3], LATENT, DEC_HID)
    p["w_mid_d"], p["b_mid_d"] = _linear_params(keys[4], DEC_HID, DEC_HID)
    p["w_out_d"], p["b_out_d"] = _linear_params(keys[5], DEC_HID, SOURCE)
    return p


def _reference_forward(x, eps, p):
    """Pure-JAX f32 reference following the PyTorch module exactly."""
    h = jax.nn.relu(x @ p["w_in_e"] + p["b_in_e"])
    mu = h @ p["w_mu"] + p["b_mu"]
    log_sigma = h @ p["w_sig"] + p["b_sig"]
    sigma = jnp.exp(log_sigma)
    z = mu + sigma * eps
    kl = jnp.sum(sigma ** 2 + mu ** 2 - log_sigma - 0.5)
    d = jax.nn.relu(z @ p["w_in_d"] + p["b_in_d"])
    d = jax.nn.relu(d)                         # second ReLU from the mid-layer loop (idempotent)
    d = d @ p["w_mid_d"] + p["b_mid_d"]
    d = d @ p["w_out_d"] + p["b_out_d"]        # no activation between mid and out
    return jax.nn.sigmoid(d), kl


if __name__ == "__main__":
    key = jax.random.PRNGKey(0)
    k_params, k_x, k_eps = jax.random.split(key, 3)

    B = 8
    x = jax.random.normal(k_x, (B, SOURCE), jnp.float32)
    # eps plays the role of torch.randn_like(sigma) — sampled outside the kernel
    # for determinism and passed in.
    eps = jax.random.normal(k_eps, (B, LATENT), jnp.float32)

    params = init_params(k_params)
    kparams = prepare_kernel_params(params)

    recon, kl = vae_forward(x, eps, kparams)
    recon = jax.block_until_ready(recon)
    kl = jax.block_until_ready(kl)

    ref_recon, ref_kl = _reference_forward(x, eps, params)
    assert recon.shape == (B, SOURCE)
    # bf16 matmul inputs (f32 accumulation) -> small numeric drift vs. f32 reference
    assert jnp.allclose(recon, ref_recon, atol=2e-2, rtol=0.0)
    assert jnp.allclose(kl, ref_kl, atol=0.5, rtol=5e-2)

    print("KERNEL_OK")
</pallas_src>

<mosaic_0001>
module attributes {stable_mosaic.version = 11 : i64} {
  func.func @_vae_kernel(%arg0: i32, %arg1: memref<8x16xf32, #tpu.memory_space<vmem>>, %arg2: memref<8x256xbf16, #tpu.memory_space<vmem>>, %arg3: memref<1x256xf32, #tpu.memory_space<vmem>>, %arg4: memref<256x16xbf16, #tpu.memory_space<vmem>>, %arg5: memref<1x16xf32, #tpu.memory_space<vmem>>, %arg6: memref<8x256xbf16, #tpu.memory_space<vmem>>, %arg7: memref<1x256xf32, #tpu.memory_space<vmem>>, %arg8: memref<256x8xbf16, #tpu.memory_space<vmem>>, %arg9: memref<1x8xf32, #tpu.memory_space<vmem>>, %arg10: memref<8x8xf32, #tpu.memory_space<vmem>>) attributes {dimension_semantics = [#tpu.dimension_semantics<parallel>], iteration_bounds = array<i64: 1>, scalar_prefetch = 0 : i64, scratch_operands = 0 : i64, tpu.core_type = #tpu.core_type<tc>, window_params = [{transform_indices = @transform_0, window_bounds = array<i64: 8, 16>}, {pipeline_mode = #tpu.pipeline_mode<synchronous>, transform_indices = @transform_1, window_bounds = array<i64: 8, 256>}, {pipeline_mode = #tpu.pipeline_mode<synchronous>, transform_indices = @transform_2, window_bounds = array<i64: 1, 256>}, {pipeline_mode = #tpu.pipeline_mode<synchronous>, transform_indices = @transform_3, window_bounds = array<i64: 256, 16>}, {pipeline_mode = #tpu.pipeline_mode<synchronous>, transform_indices = @transform_4, window_bounds = array<i64: 1, 16>}, {pipeline_mode = #tpu.pipeline_mode<synchronous>, transform_indices = @transform_5, window_bounds = array<i64: 8, 256>}, {pipeline_mode = #tpu.pipeline_mode<synchronous>, transform_indices = @transform_6, window_bounds = array<i64: 1, 256>}, {pipeline_mode = #tpu.pipeline_mode<synchronous>, transform_indices = @transform_7, window_bounds = array<i64: 256, 8>}, {pipeline_mode = #tpu.pipeline_mode<synchronous>, transform_indices = @transform_8, window_bounds = array<i64: 1, 8>}, {transform_indices = @transform_9, window_bounds = array<i64: 8, 8>}]} {
    %c0 = arith.constant 0 : index
    %c0_0 = arith.constant 0 : index
    %0 = vector.load %arg1[%c0, %c0_0] : memref<8x16xf32, #tpu.memory_space<vmem>>, vector<8x16xf32>
    %1 = vector.extract_strided_slice %0 {offsets = [0, 0], sizes = [8, 8], strides = [1, 1]} : vector<8x16xf32> to vector<8x8xf32>
    %2 = arith.truncf %1 : vector<8x8xf32> to vector<8x8xbf16>
    %3 = vector.extract_strided_slice %0 {offsets = [0, 8], sizes = [8, 8], strides = [1, 1]} : vector<8x16xf32> to vector<8x8xf32>
    %c0_1 = arith.constant 0 : index
    %c0_2 = arith.constant 0 : index
    %4 = vector.load %arg2[%c0_1, %c0_2] : memref<8x256xbf16, #tpu.memory_space<vmem>>, vector<8x256xbf16>
    %cst = arith.constant dense<0.000000e+00> : vector<8x256xf32>
    %5 = tpu.matmul %2, %4, %cst {dimension_numbers = #tpu.dot_dimension_numbers<[1], [0], [0], [1], [0, 0, 1, 1], [], []>} : vector<8x8xbf16>, vector<8x256xbf16>, vector<8x256xf32> -> vector<8x256xf32>
    %c0_3 = arith.constant 0 : index
    %c0_4 = arith.constant 0 : index
    %6 = vector.load %arg3[%c0_3, %c0_4] : memref<1x256xf32, #tpu.memory_space<vmem>>, vector<1x256xf32>
    %7 = vector.broadcast %6 : vector<1x256xf32> to vector<8x256xf32>
    %8 = arith.addf %5, %7 : vector<8x256xf32>
    %cst_5 = arith.constant 0.000000e+00 : f32
    %9 = vector.broadcast %cst_5 : f32 to vector<8x256xf32>
    %10 = arith.maximumf %8, %9 : vector<8x256xf32>
    %11 = arith.truncf %10 : vector<8x256xf32> to vector<8x256xbf16>
    %c0_6 = arith.constant 0 : index
    %c0_7 = arith.constant 0 : index
    %12 = vector.load %arg4[%c0_6, %c0_7] : memref<256x16xbf16, #tpu.memory_space<vmem>>, vector<256x16xbf16>
    %cst_8 = arith.constant dense<0.000000e+00> : vector<8x16xf32>
    %13 = tpu.matmul %11, %12, %cst_8 {dimension_numbers = #tpu.dot_dimension_numbers<[1], [0], [0], [1], [0, 0, 1, 1], [], []>} : vector<8x256xbf16>, vector<256x16xbf16>, vector<8x16xf32> -> vector<8x16xf32>
    %c0_9 = arith.constant 0 : index
    %c0_10 = arith.constant 0 : index
    %14 = vector.load %arg5[%c0_9, %c0_10] : memref<1x16xf32, #tpu.memory_space<vmem>>, vector<1x16xf32>
    %15 = vector.broadcast %14 : vector<1x16xf32> to vector<8x16xf32>
    %16 = arith.addf %13, %15 : vector<8x16xf32>
    %17 = vector.extract_strided_slice %16 {offsets = [0, 0], sizes = [8, 8], strides = [1, 1]} : vector<8x16xf32> to vector<8x8xf32>
    %18 = vector.extract_strided_slice %16 {offsets = [0, 8], sizes = [8, 8], strides = [1, 1]} : vector<8x16xf32> to vector<8x8xf32>
    %19 = math.exp %18 : vector<8x8xf32>
    %20 = arith.mulf %19, %3 : vector<8x8xf32>
    %21 = arith.addf %17, %20 : vector<8x8xf32>
    %22 = tpu.iota {dimensions = array<i32: 1>} : vector<8x8xi32>
    %c2_i32 = arith.constant 2 : i32
    %23 = vector.broadcast %c2_i32 : i32 to vector<8x8xi32>
    %24 = arith.cmpi slt, %22, %23 : vector<8x8xi32>
    %25 = arith.mulf %19, %19 : vector<8x8xf32>
    %26 = arith.mulf %17, %17 : vector<8x8xf32>
    %27 = arith.addf %25, %26 : vector<8x8xf32>
    %28 = arith.subf %27, %18 : vector<8x8xf32>
    %cst_11 = arith.constant 5.000000e-01 : f32
    %29 = vector.broadcast %cst_11 : f32 to vector<8x8xf32>
    %30 = arith.subf %28, %29 : vector<8x8xf32>
    %cst_12 = arith.constant 0.000000e+00 : f32
    %31 = vector.broadcast %cst_12 : f32 to vector<8x8xf32>
    %32 = arith.select %24, %30, %31 : vector<8x8xi1>, vector<8x8xf32>
    %cst_13 = arith.constant dense<0.000000e+00> : vector<8xf32>
    %33 = vector.multi_reduction <add>, %32, %cst_13 [1] : vector<8x8xf32> to vector<8xf32>
    %34 = vector.shape_cast %33 : vector<8xf32> to vector<8x1xf32>
    %35 = arith.truncf %21 : vector<8x8xf32> to vector<8x8xbf16>
    %c0_14 = arith.constant 0 : index
    %c0_15 = arith.constant 0 : index
    %36 = vector.load %arg6[%c0_14, %c0_15] : memref<8x256xbf16, #tpu.memory_space<vmem>>, vector<8x256xbf16>
    %cst_16 = arith.constant dense<0.000000e+00> : vector<8x256xf32>
    %37 = tpu.matmul %35, %36, %cst_16 {dimension_numbers = #tpu.dot_dimension_numbers<[1], [0], [0], [1], [0, 0, 1, 1], [], []>} : vector<8x8xbf16>, vector<8x256xbf16>, vector<8x256xf32> -> vector<8x256xf32>
    %c0_17 = arith.constant 0 : index
    %c0_18 = arith.constant 0 : index
    %38 = vector.load %arg7[%c0_17, %c0_18] : memref<1x256xf32, #tpu.memory_space<vmem>>, vector<1x256xf32>
    %39 = vector.broadcast %38 : vector<1x256xf32> to vector<8x256xf32>
    %40 = arith.addf %37, %39 : vector<8x256xf32>
    %cst_19 = arith.constant 0.000000e+00 : f32
    %41 = vector.broadcast %cst_19 : f32 to vector<8x256xf32>
    %42 = arith.maximumf %40, %41 : vector<8x256xf32>
    %43 = arith.truncf %42 : vector<8x256xf32> to vector<8x256xbf16>
    %c0_20 = arith.constant 0 : index
    %c0_21 = arith.constant 0 : index
    %44 = vector.load %arg8[%c0_20, %c0_21] : memref<256x8xbf16, #tpu.memory_space<vmem>>, vector<256x8xbf16>
    %cst_22 = arith.constant dense<0.000000e+00> : vector<8x8xf32>
    %45 = tpu.matmul %43, %44, %cst_22 {dimension_numbers = #tpu.dot_dimension_numbers<[1], [0], [0], [1], [0, 0, 1, 1], [], []>} : vector<8x256xbf16>, vector<256x8xbf16>, vector<8x8xf32> -> vector<8x8xf32>
    %c0_23 = arith.constant 0 : index
    %c0_24 = arith.constant 0 : index
    %46 = vector.load %arg9[%c0_23, %c0_24] : memref<1x8xf32, #tpu.memory_space<vmem>>, vector<1x8xf32>
    %47 = vector.broadcast %46 : vector<1x8xf32> to vector<8x8xf32>
    %48 = arith.addf %45, %47 : vector<8x8xf32>
    %49 = arith.negf %48 : vector<8x8xf32>
    %50 = math.exp %49 : vector<8x8xf32>
    %cst_25 = arith.constant 1.000000e+00 : f32
    %51 = vector.broadcast %cst_25 : f32 to vector<8x8xf32>
    %52 = arith.addf %51, %50 : vector<8x8xf32>
    %53 = arith.divf %51, %52 : vector<8x8xf32>
    %54 = tpu.iota {dimensions = array<i32: 1>} : vector<8x8xi32>
    %c6_i32 = arith.constant 6 : i32
    %55 = vector.broadcast %c6_i32 : i32 to vector<8x8xi32>
    %56 = arith.cmpi slt, %54, %55 : vector<8x8xi32>
    %c6_i32_26 = arith.constant 6 : i32
    %57 = vector.broadcast %c6_i32_26 : i32 to vector<8x8xi32>
    %58 = arith.cmpi eq, %54, %57 : vector<8x8xi32>
    %cst_27 = arith.constant 0.000000e+00 : f32
    %59 = vector.shape_cast %34 : vector<8x1xf32> to vector<8x1xf32>
    %60 = vector.broadcast %59 : vector<8x1xf32> to vector<8x8xf32>
    %61 = vector.broadcast %cst_27 : f32 to vector<8x8xf32>
    %62 = arith.select %58, %60, %61 : vector<8x8xi1>, vector<8x8xf32>
    %63 = arith.select %56, %53, %62 : vector<8x8xi1>, vector<8x8xf32>
    %c0_28 = arith.constant 0 : index
    %c0_29 = arith.constant 0 : index
    %64 = vector.load %arg10[%c0_28, %c0_29] : memref<8x8xf32, #tpu.memory_space<vmem>>, vector<8x8xf32>
    tpu.vector_store %arg10[%c0_28, %c0_29], %63 {strides = array<i32>} : memref<8x8xf32, #tpu.memory_space<vmem>>, vector<8x8xf32>,
    return
  }
  func.func @transform_0(%arg0: i32) -> (i32, i32) {
    %c0_i32 = arith.constant 0 : i32
    %c0_i32_0 = arith.constant 0 : i32
    return %arg0, %c0_i32 : i32, i32
  }
  func.func @transform_1(%arg0: i32) -> (i32, i32) {
    %c0_i32 = arith.constant 0 : i32
    %c0_i32_0 = arith.constant 0 : i32
    %c0_i32_1 = arith.constant 0 : i32
    return %c0_i32, %c0_i32_0 : i32, i32
  }
  func.func @transform_2(%arg0: i32) -> (i32, i32) {
    %c0_i32 = arith.constant 0 : i32
    %c0_i32_0 = arith.constant 0 : i32
    %c0_i32_1 = arith.constant 0 : i32
    return %c0_i32, %c0_i32_0 : i32, i32
  }
  func.func @transform_3(%arg0: i32) -> (i32, i32) {
    %c0_i32 = arith.constant 0 : i32
    %c0_i32_0 = arith.constant 0 : i32
    %c0_i32_1 = arith.constant 0 : i32
    return %c0_i32, %c0_i32_0 : i32, i32
  }
  func.func @transform_4(%arg0: i32) -> (i32, i32) {
    %c0_i32 = arith.constant 0 : i32
    %c0_i32_0 = arith.constant 0 : i32
    %c0_i32_1 = arith.constant 0 : i32
    return %c0_i32, %c0_i32_0 : i32, i32
  }
  func.func @transform_5(%arg0: i32) -> (i32, i32) {
    %c0_i32 = arith.constant 0 : i32
    %c0_i32_0 = arith.constant 0 : i32
    %c0_i32_1 = arith.constant 0 : i32
    return %c0_i32, %c0_i32_0 : i32, i32
  }
  func.func @transform_6(%arg0: i32) -> (i32, i32) {
    %c0_i32 = arith.constant 0 : i32
    %c0_i32_0 = arith.constant 0 : i32
    %c0_i32_1 = arith.constant 0 : i32
    return %c0_i32, %c0_i32_0 : i32, i32
  }
  func.func @transform_7(%arg0: i32) -> (i32, i32) {
    %c0_i32 = arith.constant 0 : i32
    %c0_i32_0 = arith.constant 0 : i32
    %c0_i32_1 = arith.constant 0 : i32
    return %c0_i32, %c0_i32_0 : i32, i32
  }
  func.func @transform_8(%arg0: i32) -> (i32, i32) {
    %c0_i32 = arith.constant 0 : i32
    %c0_i32_0 = arith.constant 0 : i32
    %c0_i32_1 = arith.constant 0 : i32
    return %c0_i32, %c0_i32_0 : i32, i32
  }
  func.func @transform_9(%arg0: i32) -> (i32, i32) {
    %c0_i32 = arith.constant 0 : i32
    %c0_i32_0 = arith.constant 0 : i32
    return %arg0, %c0_i32 : i32, i32
  }
}

</mosaic_0001>

<llo_original>
// kernel: vae_forward.1
$region0: #{vae_forward.1}
  #allocation0 [shape = 'u32[]', space=smem, size = 0x4, offset = 0x4, fixed_abs, tag = 'smem constant byte address 0x4 - core index']
  #allocation1 [shape = 'u32[144,128]{1,0:T(1,128)}', space=vmem, size = 0x12000, scoped, tag = 'internal scratch']
  %s0 = inlined_call_operand.vmem [shape: f32[8,16], index: 0, kind: input, shape index: {}]
  %s1 = inlined_call_operand.vmem [shape: bf16[8,256], index: 1, kind: input, shape index: {}]
  %s2 = inlined_call_operand.vmem [shape: f32[1,256], index: 2, kind: input, shape index: {}]
  %s3 = inlined_call_operand.vmem [shape: bf16[256,16], index: 3, kind: input, shape index: {}]
  %s4 = inlined_call_operand.vmem [shape: f32[1,16], index: 4, kind: input, shape index: {}]
  %s5 = inlined_call_operand.vmem [shape: bf16[8,256], index: 5, kind: input, shape index: {}]
  %s6 = inlined_call_operand.vmem [shape: f32[1,256], index: 6, kind: input, shape index: {}]
  %s7 = inlined_call_operand.vmem [shape: bf16[256,8], index: 7, kind: input, shape index: {}]
  %s8 = inlined_call_operand.vmem [shape: f32[1,8], index: 8, kind: input, shape index: {}]
  %s9 = inlined_call_operand.vmem [shape: f32[8,8], index: 9, kind: output, shape index: {}]
  %s10 = sld [smem:[#allocation0]]
  $region46: #{vae_forward.1} parent=0
    _
  %s12 = ssub.s32 1, %s10
  %s13 = scalar_select 0, %s12, %s10
  // Predicated region
  $region2: #{vae_forward.1} parent=0 // pred_check
    _
  $region3: #{vae_forward.1} parent=0 // pred_check_branch
    %15 = sbr.rel (0) target = $region5
  $region4: #{vae_forward.1} parent=0 // pred_region
    _
  $region5: #{vae_forward.1} parent=0 // pred_fallthru
    _
  // Predicated region
  $region6: #{vae_forward.1} parent=0 // pred_check
    _
  $region7: #{vae_forward.1} parent=0 // pred_check_branch
    %17 = sbr.rel (0) target = $region9
  $region8: #{vae_forward.1} parent=0 // pred_region
    _
  $region9: #{vae_forward.1} parent=0 // pred_fallthru
    _
  // Predicated region
  $region10: #{vae_forward.1} parent=0 // pred_check
    _
  $region11: #{vae_forward.1} parent=0 // pred_check_branch
    %19 = sbr.rel (0) target = $region13
  $region12: #{vae_forward.1} parent=0 // pred_region
    _
  $region13: #{vae_forward.1} parent=0 // pred_fallthru
    _
  // Predicated region
  $region14: #{vae_forward.1} parent=0 // pred_check
    _
  $region15: #{vae_forward.1} parent=0 // pred_check_branch
    %21 = sbr.rel (0) target = $region17
  $region16: #{vae_forward.1} parent=0 // pred_region
    _
  $region17: #{vae_forward.1} parent=0 // pred_fallthru
    _
  // Predicated region
  $region18: #{vae_forward.1} parent=0 // pred_check
    _
  $region19: #{vae_forward.1} parent=0 // pred_check_branch
    %23 = sbr.rel (0) target = $region21
  $region20: #{vae_forward.1} parent=0 // pred_region
    _
  $region21: #{vae_forward.1} parent=0 // pred_fallthru
    _
  // Predicated region
  $region22: #{vae_forward.1} parent=0 // pred_check
    _
  $region23: #{vae_forward.1} parent=0 // pred_check_branch
    %25 = sbr.rel (0) target = $region25
  $region24: #{vae_forward.1} parent=0 // pred_region
    _
  $region25: #{vae_forward.1} parent=0 // pred_fallthru
    _
  // Predicated region
  $region26: #{vae_forward.1} parent=0 // pred_check
    _
  $region27: #{vae_forward.1} parent=0 // pred_check_branch
    %27 = sbr.rel (0) target = $region29
  $region28: #{vae_forward.1} parent=0 // pred_region
    _
  $region29: #{vae_forward.1} parent=0 // pred_fallthru
    _
  // Predicated region
  $region30: #{vae_forward.1} parent=0 // pred_check
    _
  $region31: #{vae_forward.1} parent=0 // pred_check_branch
    %29 = sbr.rel (0) target = $region33
  $region32: #{vae_forward.1} parent=0 // pred_region
    _
  $region33: #{vae_forward.1} parent=0 // pred_fallthru
    _
  // Predicated region
  $region34: #{vae_forward.1} parent=0 // pred_check
    _
  $region35: #{vae_forward.1} parent=0 // pred_check_branch
    %31 = sbr.rel (0) target = $region37
  $region36: #{vae_forward.1} parent=0 // pred_region
    _
  $region37: #{vae_forward.1} parent=0 // pred_fallthru
    _
  %v33 = vld [vmem:[%s0] sm:$0xff]
  %v34 = vpack.c.bf16 %v33, %v33
  %v35 = vld [vmem:[%s1] sm:$0xff]
  %v36 = vld [vmem:[%s2] sm:$0x3]
  %v38 = vlaneseq
  %v39 = vshrl.u32 %v38, 7
  %v40 = vsub.s32 0, %v39
  %v41 = vrot.slane %v36, %v40
  %v42 = vlaneseq
  %v43 = vshrl.u32 %v42, 7
  %v44 = vsub.s32 1, %v43
  %v45 = vrot.slane %v36, %v44
  %v49 = vunpack.c.l.b16 %v35
  %v50 = vunpack.c.h.b16 %v35
  %v51 = vpack.c.b16 %v49, %v49
  %v52 = vpack.c.b16 %v50, %v50
  %vm53 = vcmask 64512
  %v55 = vsel %vm53, %v34, 0
  %vm57 = vcmask 1043456
  %v59 = vsel %vm57, %v51, 0
  %v62 = vsel %vm57, %v52, 0
  %64 = vmatprep.subr.bf16.mxu0 %v62
  %65 = vmatpush1.bf16.msra.mxu0 %v59
  %66 = vmatprep.subr.bf16.mxu0 0
  %67 = vmatpush1.bf16.msra.mxu0 0
  %68 = vmatprep.subr.bf16.mxu0 0
  %69 = vmatpush1.bf16.msra.mxu0 0
  %70 = vmatprep.subr.bf16.mxu0 0
  %71 = vmatpush1.bf16.msra.mxu0 0
  %72 = vmatprep.subr.bf16.mxu0 0
  %73 = vmatpush1.bf16.msra.mxu0 0
  %74 = vmatprep.subr.bf16.mxu0 0
  %75 = vmatpush1.bf16.msra.mxu0 0
  %76 = vmatprep.subr.bf16.mxu0 0
  %77 = vmatpush1.bf16.msra.mxu0 0
  %78 = vmatprep.subr.bf16.mxu0 0
  %79 = vmatpush1.bf16.msra.mxu0 0
  %80 = vmatprep.subr.bf16.mxu0 0
  %81 = vmatpush1.bf16.msra.mxu0 0
  %82 = vmatprep.subr.bf16.mxu0 0
  %83 = vmatpush1.bf16.msra.mxu0 0
  %84 = vmatprep.subr.bf16.mxu0 0
  %85 = vmatpush1.bf16.msra.mxu0 0
  %86 = vmatprep.subr.bf16.mxu0 0
  %87 = vmatpush1.bf16.msra.mxu0 0
  %88 = vmatprep.subr.bf16.mxu0 0
  %89 = vmatpush1.bf16.msra.mxu0 0
  %90 = vmatprep.subr.bf16.mxu0 0
  %91 = vmatpush1.bf16.msra.mxu0 0
  %92 = vmatprep.subr.bf16.mxu0 0
  %93 = vmatpush1.bf16.msra.mxu0 0
  %94 = vmatprep.subr.bf16.mxu0 0
  %95 = vmatpush1.bf16.msra.mxu0 0
  %96 = vmatprep.mubr.bf16.mxu0 0
  %97 = vmatmul.mubr.bf16.gmra.mrb[0].mxu0 %v55
  %v98 = vpop.f32.mrb[0].mxu0
  %v99 = vadd.f32 %v41, %v98
  %v100 = vpop.f32.mrb[0].mxu0
  %v101 = vadd.f32 %v45, %v100
  %v102 = vpop.f32.mrb[0].mxu0
  %v103 = vpop.f32.mrb[0].mxu0
  %104 = vdwg.mxu0
  %v105 = vmax.f32 %v99, 0.0
  %v106 = vmax.f32 %v101, 0.0
  %v107 = vpack.c.bf16 %v105, %v105
  %v108 = vpack.c.bf16 %v106, %v106
  %v109 = vld [vmem:[%s3] sm:$0xf]
  %v110 = vld [vmem:[%s3 + $0x4] sm:$0xf]
  %v111 = vld [vmem:[%s3 + $0x8] sm:$0xf]
  %v112 = vld [vmem:[%s3 + $0xc] sm:$0xf]
  %v113 = vld [vmem:[%s3 + $0x10] sm:$0xf]
  %v114 = vld [vmem:[%s3 + $0x14] sm:$0xf]
  %v115 = vld [vmem:[%s3 + $0x18] sm:$0xf]
  %v116 = vld [vmem:[%s3 + $0x1c] sm:$0xf]
  %v117 = vld [vmem:[%s3 + $0x20] sm:$0xf]
  %v118 = vld [vmem:[%s3 + $0x24] sm:$0xf]
  %v119 = vld [vmem:[%s3 + $0x28] sm:$0xf]
  %v120 = vld [vmem:[%s3 + $0x2c] sm:$0xf]
  %v121 = vld [vmem:[%s3 + $0x30] sm:$0xf]
  %v122 = vld [vmem:[%s3 + $0x34] sm:$0xf]
  %v123 = vld [vmem:[%s3 + $0x38] sm:$0xf]
  %v124 = vld [vmem:[%s3 + $0x3c] sm:$0xf]
  %v125 = vld [vmem:[%s3 + $0x40] sm:$0xf]
  %v126 = vld [vmem:[%s3 + $0x44] sm:$0xf]
  %v127 = vld [vmem:[%s3 + $0x48] sm:$0xf]
  %v128 = vld [vmem:[%s3 + $0x4c] sm:$0xf]
  %v129 = vld [vmem:[%s3 + $0x50] sm:$0xf]
  %v130 = vld [vmem:[%s3 + $0x54] sm:$0xf]
  %v131 = vld [vmem:[%s3 + $0x58] sm:$0xf]
  %v132 = vld [vmem:[%s3 + $0x5c] sm:$0xf]
  %v133 = vld [vmem:[%s3 + $0x60] sm:$0xf]
  %v134 = vld [vmem:[%s3 + $0x64] sm:$0xf]
  %v135 = vld [vmem:[%s3 + $0x68] sm:$0xf]
  %v136 = vld [vmem:[%s3 + $0x6c] sm:$0xf]
  %v137 = vld [vmem:[%s3 + $0x70] sm:$0xf]
  %v138 = vld [vmem:[%s3 + $0x74] sm:$0xf]
  %v139 = vld [vmem:[%s3 + $0x78] sm:$0xf]
  %v140 = vld [vmem:[%s3 + $0x7c] sm:$0xf]
  %v141 = vld [vmem:[%s4] sm:$0x1]
  %v143 = vlaneseq
  %v144 = vshrl.u32 %v143, 7
  %v145 = vsub.s32 0, %v144
  %v146 = vrot.slane %v141, %v145
  %v180 = vunpack.c.l.b16 %v109
  %v181 = vunpack.c.l.b16 %v110
  %v182 = vunpack.c.l.b16 %v111
  %v183 = vunpack.c.l.b16 %v112
  %v184 = vunpack.c.l.b16 %v113
  %v185 = vunpack.c.l.b16 %v114
  %v186 = vunpack.c.l.b16 %v115
  %v187 = vunpack.c.l.b16 %v116
  %v188 = vunpack.c.l.b16 %v117
  %v189 = vunpack.c.l.b16 %v118
  %v190 = vunpack.c.l.b16 %v119
  %v191 = vunpack.c.l.b16 %v120
  %v192 = vunpack.c.l.b16 %v121
  %v193 = vunpack.c.l.b16 %v122
  %v194 = vunpack.c.l.b16 %v123
  %v195 = vunpack.c.l.b16 %v124
  %v196 = vunpack.c.l.b16 %v125
  %v197 = vunpack.c.l.b16 %v126
  %v198 = vunpack.c.l.b16 %v127
  %v199 = vunpack.c.l.b16 %v128
  %v200 = vunpack.c.l.b16 %v129
  %v201 = vunpack.c.l.b16 %v130
  %v202 = vunpack.c.l.b16 %v131
  %v203 = vunpack.c.l.b16 %v132
  %v204 = vunpack.c.l.b16 %v133
  %v205 = vunpack.c.l.b16 %v134
  %v206 = vunpack.c.l.b16 %v135
  %v207 = vunpack.c.l.b16 %v136
  %v208 = vunpack.c.l.b16 %v137
  %v209 = vunpack.c.l.b16 %v138
  %v210 = vunpack.c.l.b16 %v139
  %v211 = vunpack.c.l.b16 %v140
  %v212 = vpack.c.b16 %v181, %v180
  %v213 = vpack.c.b16 %v183, %v182
  %v214 = vpack.c.b16 %v185, %v184
  %v215 = vpack.c.b16 %v187, %v186
  %v216 = vpack.c.b16 %v189, %v188
  %v217 = vpack.c.b16 %v191, %v190
  %v218 = vpack.c.b16 %v193, %v192
  %v219 = vpack.c.b16 %v195, %v194
  %v220 = vpack.c.b16 %v197, %v196
  %v221 = vpack.c.b16 %v199, %v198
  %v222 = vpack.c.b16 %v201, %v200
  %v223 = vpack.c.b16 %v203, %v202
  %v224 = vpack.c.b16 %v205, %v204
  %v225 = vpack.c.b16 %v207, %v206
  %v226 = vpack.c.b16 %v209, %v208
  %v227 = vpack.c.b16 %v211, %v210
  %244 = vmatprep.subr.bf16.mxu0 0
  %245 = vmatpush1.bf16.msra.mxu0 %v212
  %246 = vmatprep.subr.bf16.mxu0 0
  %247 = vmatpush1.bf16.msra.mxu0 %v213
  %248 = vmatprep.subr.bf16.mxu0 0
  %249 = vmatpush1.bf16.msra.mxu0 %v214
  %250 = vmatprep.subr.bf16.mxu0 0
  %251 = vmatpush1.bf16.msra.mxu0 %v215
  %252 = vmatprep.subr.bf16.mxu0 0
  %253 = vmatpush1.bf16.msra.mxu0 %v216
  %254 = vmatprep.subr.bf16.mxu0 0
  %255 = vmatpush1.bf16.msra.mxu0 %v217
  %256 = vmatprep.subr.bf16.mxu0 0
  %257 = vmatpush1.bf16.msra.mxu0 %v218
  %258 = vmatprep.subr.bf16.mxu0 0
  %259 = vmatpush1.bf16.msra.mxu0 %v219
  %260 = vmatprep.subr.bf16.mxu0 0
  %261 = vmatpush1.bf16.msra.mxu0 %v220
  %262 = vmatprep.subr.bf16.mxu0 0
  %263 = vmatpush1.bf16.msra.mxu0 %v221
  %264 = vmatprep.subr.bf16.mxu0 0
  %265 = vmatpush1.bf16.msra.mxu0 %v222
  %266 = vmatprep.subr.bf16.mxu0 0
  %267 = vmatpush1.bf16.msra.mxu0 %v223
  %268 = vmatprep.subr.bf16.mxu0 0
  %269 = vmatpush1.bf16.msra.mxu0 %v224
  %270 = vmatprep.subr.bf16.mxu0 0
  %271 = vmatpush1.bf16.msra.mxu0 %v225
  %272 = vmatprep.subr.bf16.mxu0 0
  %273 = vmatpush1.bf16.msra.mxu0 %v226
  %274 = vmatprep.subr.bf16.mxu0 0
  %275 = vmatpush1.bf16.msra.mxu0 %v227
  %276 = vmatprep.mubr.bf16.mxu0 %v108
  %277 = vmatmul.mubr.bf16.gmra.mrb[0].mxu0 %v107
  %v278 = vpop.f32.mrb[0].mxu0
  %v279 = vadd.f32 %v146, %v278
  %v280 = vpop.f32.mrb[0].mxu0
  %v281 = vpop.f32.mrb[0].mxu0
  %v282 = vpop.f32.mrb[0].mxu0
  %283 = vdwg.mxu0
  %v284 = vmul.f32 %v279, 1.442695
  %v285 = vpow.pop %v284
  %v286 = vmul.f32 %v285, %v33
  %288 = vrot.lane.b32.xlu0 %v286, 120
  %v289 = vpop.permute.xlu0 %288
  %v291 = vadd.f32 %v279, %v289
  %v292 = vlaneseq
  %v293 = vand.u32 %v292, 127
  %vm294 = vcmp.lt.s32.totalorder %v293, 2
  %v295 = vmul.f32 %v285, %v285
  %v296 = vmul.f32 %v279, %v279
  %298 = vrot.lane.b32.xlu0 %v296, 8
  %v299 = vpop.permute.xlu0 %298
  %v301 = vadd.f32 %v295, %v299
  %v302 = vsub.f32 %v301, %v279
  %v303 = vsub.f32 %v302, 0.5
  %305 = vrot.lane.b32.xlu0 %v303, 120
  %v306 = vpop.permute.xlu0 %305
  %v308 = vsel %vm294, %v306, 0.0
  %v309 = vsel %vm53, %v308, 0.0
  %310 = vadd.xlane.f32.xlu0 %v309
  %v311 = vpop.xlane.xlu0 %310
  %v312 = vpack.c.bf16 %v291, %v291
  %v313 = vld [vmem:[%s5] sm:$0xff]
  %v314 = vld [vmem:[%s6] sm:$0x3]
  %v316 = vlaneseq
  %v317 = vshrl.u32 %v316, 7
  %v318 = vsub.s32 0, %v317
  %v319 = vrot.slane %v314, %v318
  %v320 = vlaneseq
  %v321 = vshrl.u32 %v320, 7
  %v322 = vsub.s32 1, %v321
  %v323 = vrot.slane %v314, %v322
  %v327 = vunpack.c.l.b16 %v313
  %v328 = vunpack.c.h.b16 %v313
  %v329 = vpack.c.b16 %v327, %v327
  %v330 = vpack.c.b16 %v328, %v328
  %v332 = vsel %vm53, %v312, 0
  %v335 = vsel %vm57, %v329, 0
  %v338 = vsel %vm57, %v330, 0
  %340 = vmatprep.subr.bf16.mxu0 %v338
  %341 = vmatpush1.bf16.msra.mxu0 %v335
  %342 = vmatprep.subr.bf16.mxu0 0
  %343 = vmatpush1.bf16.msra.mxu0 0
  %344 = vmatprep.subr.bf16.mxu0 0
  %345 = vmatpush1.bf16.msra.mxu0 0
  %346 = vmatprep.subr.bf16.mxu0 0
  %347 = vmatpush1.bf16.msra.mxu0 0
  %348 = vmatprep.subr.bf16.mxu0 0
  %349 = vmatpush1.bf16.msra.mxu0 0
  %350 = vmatprep.subr.bf16.mxu0 0
  %351 = vmatpush1.bf16.msra.mxu0 0
  %352 = vmatprep.subr.bf16.mxu0 0
  %353 = vmatpush1.bf16.msra.mxu0 0
  %354 = vmatprep.subr.bf16.mxu0 0
  %355 = vmatpush1.bf16.msra.mxu0 0
  %356 = vmatprep.subr.bf16.mxu0 0
  %357 = vmatpush1.bf16.msra.mxu0 0
  %358 = vmatprep.subr.bf16.mxu0 0
  %359 = vmatpush1.bf16.msra.mxu0 0
  %360 = vmatprep.subr.bf16.mxu0 0
  %361 = vmatpush1.bf16.msra.mxu0 0
  %362 = vmatprep.subr.bf16.mxu0 0
  %363 = vmatpush1.bf16.msra.mxu0 0
  %364 = vmatprep.subr.bf16.mxu0 0
  %365 = vmatpush1.bf16.msra.mxu0 0
  %366 = vmatprep.subr.bf16.mxu0 0
  %367 = vmatpush1.bf16.msra.mxu0 0
  %368 = vmatprep.subr.bf16.mxu0 0
  %369 = vmatpush1.bf16.msra.mxu0 0
  %370 = vmatprep.subr.bf16.mxu0 0
  %371 = vmatpush1.bf16.msra.mxu0 0
  %372 = vmatprep.mubr.bf16.mxu0 0
  %373 = vmatmul.mubr.bf16.gmra.mrb[0].mxu0 %v332
  %v374 = vpop.f32.mrb[0].mxu0
  %v375 = vadd.f32 %v319, %v374
  %v376 = vpop.f32.mrb[0].mxu0
  %v377 = vadd.f32 %v323, %v376
  %v378 = vpop.f32.mrb[0].mxu0
  %v379 = vpop.f32.mrb[0].mxu0
  %380 = vdwg.mxu0
  %v381 = vmax.f32 %v375, 0.0
  %v382 = vmax.f32 %v377, 0.0
  %v383 = vpack.c.bf16 %v381, %v381
  %v384 = vpack.c.bf16 %v382, %v382
  %v385 = vld [vmem:[%s7] sm:$0xf]
  %v386 = vld [vmem:[%s7 + $0x4] sm:$0xf]
  %v387 = vld [vmem:[%s7 + $0x8] sm:$0xf]
  %v388 = vld [vmem:[%s7 + $0xc] sm:$0xf]
  %v389 = vld [vmem:[%s7 + $0x10] sm:$0xf]
  %v390 = vld [vmem:[%s7 + $0x14] sm:$0xf]
  %v391 = vld [vmem:[%s7 + $0x18] sm:$0xf]
  %v392 = vld [vmem:[%s7 + $0x1c] sm:$0xf]
  %v393 = vld [vmem:[%s7 + $0x20] sm:$0xf]
  %v394 = vld [vmem:[%s7 + $0x24] sm:$0xf]
  %v395 = vld [vmem:[%s7 + $0x28] sm:$0xf]
  %v396 = vld [vmem:[%s7 + $0x2c] sm:$0xf]
  %v397 = vld [vmem:[%s7 + $0x30] sm:$0xf]
  %v398 = vld [vmem:[%s7 + $0x34] sm:$0xf]
  %v399 = vld [vmem:[%s7 + $0x38] sm:$0xf]
  %v400 = vld [vmem:[%s7 + $0x3c] sm:$0xf]
  %v401 = vld [vmem:[%s7 + $0x40] sm:$0xf]
  %v402 = vld [vmem:[%s7 + $0x44] sm:$0xf]
  %v403 = vld [vmem:[%s7 + $0x48] sm:$0xf]
  %v404 = vld [vmem:[%s7 + $0x4c] sm:$0xf]
  %v405 = vld [vmem:[%s7 + $0x50] sm:$0xf]
  %v406 = vld [vmem:[%s7 + $0x54] sm:$0xf]
  %v407 = vld [vmem:[%s7 + $0x58] sm:$0xf]
  %v408 = vld [vmem:[%s7 + $0x5c] sm:$0xf]
  %v409 = vld [vmem:[%s7 + $0x60] sm:$0xf]
  %v410 = vld [vmem:[%s7 + $0x64] sm:$0xf]
  %v411 = vld [vmem:[%s7 + $0x68] sm:$0xf]
  %v412 = vld [vmem:[%s7 + $0x6c] sm:$0xf]
  %v413 = vld [vmem:[%s7 + $0x70] sm:$0xf]
  %v414 = vld [vmem:[%s7 + $0x74] sm:$0xf]
  %v415 = vld [vmem:[%s7 + $0x78] sm:$0xf]
  %v416 = vld [vmem:[%s7 + $0x7c] sm:$0xf]
  %v417 = vld [vmem:[%s8] sm:$0x1]
  %v419 = vlaneseq
  %v420 = vshrl.u32 %v419, 7
  %v421 = vsub.s32 0, %v420
  %v422 = vrot.slane %v417, %v421
  %v456 = vunpack.c.l.b16 %v385
  %v457 = vunpack.c.l.b16 %v386
  %v458 = vunpack.c.l.b16 %v387
  %v459 = vunpack.c.l.b16 %v388
  %v460 = vunpack.c.l.b16 %v389
  %v461 = vunpack.c.l.b16 %v390
  %v462 = vunpack.c.l.b16 %v391
  %v463 = vunpack.c.l.b16 %v392
  %v464 = vunpack.c.l.b16 %v393
  %v465 = vunpack.c.l.b16 %v394
  %v466 = vunpack.c.l.b16 %v395
  %v467 = vunpack.c.l.b16 %v396
  %v468 = vunpack.c.l.b16 %v397
  %v469 = vunpack.c.l.b16 %v398
  %v470 = vunpack.c.l.b16 %v399
  %v471 = vunpack.c.l.b16 %v400
  %v472 = vunpack.c.l.b16 %v401
  %v473 = vunpack.c.l.b16 %v402
  %v474 = vunpack.c.l.b16 %v403
  %v475 = vunpack.c.l.b16 %v404
  %v476 = vunpack.c.l.b16 %v405
  %v477 = vunpack.c.l.b16 %v406
  %v478 = vunpack.c.l.b16 %v407
  %v479 = vunpack.c.l.b16 %v408
  %v480 = vunpack.c.l.b16 %v409
  %v481 = vunpack.c.l.b16 %v410
  %v482 = vunpack.c.l.b16 %v411
  %v483 = vunpack.c.l.b16 %v412
  %v484 = vunpack.c.l.b16 %v413
  %v485 = vunpack.c.l.b16 %v414
  %v486 = vunpack.c.l.b16 %v415
  %v487 = vunpack.c.l.b16 %v416
  %v488 = vpack.c.b16 %v457, %v456
  %v489 = vpack.c.b16 %v459, %v458
  %v490 = vpack.c.b16 %v461, %v460
  %v491 = vpack.c.b16 %v463, %v462
  %v492 = vpack.c.b16 %v465, %v464
  %v493 = vpack.c.b16 %v467, %v466
  %v494 = vpack.c.b16 %v469, %v468
  %v495 = vpack.c.b16 %v471, %v470
  %v496 = vpack.c.b16 %v473, %v472
  %v497 = vpack.c.b16 %v475, %v474
  %v498 = vpack.c.b16 %v477, %v476
  %v499 = vpack.c.b16 %v479, %v478
  %v500 = vpack.c.b16 %v481, %v480
  %v501 = vpack.c.b16 %v483, %v482
  %v502 = vpack.c.b16 %v485, %v484
  %v503 = vpack.c.b16 %v487, %v486
  %520 = vmatprep.subr.bf16.mxu0 0
  %521 = vmatpush1.bf16.msra.mxu0 %v488
  %522 = vmatprep.subr.bf16.mxu0 0
  %523 = vmatpush1.bf16.msra.mxu0 %v489
  %524 = vmatprep.subr.bf16.mxu0 0
  %525 = vmatpush1.bf16.msra.mxu0 %v490
  %526 = vmatprep.subr.bf16.mxu0 0
  %527 = vmatpush1.bf16.msra.mxu0 %v491
  %528 = vmatprep.subr.bf16.mxu0 0
  %529 = vmatpush1.bf16.msra.mxu0 %v492
  %530 = vmatprep.subr.bf16.mxu0 0
  %531 = vmatpush1.bf16.msra.mxu0 %v493
  %532 = vmatprep.subr.bf16.mxu0 0
  %533 = vmatpush1.bf16.msra.mxu0 %v494
  %534 = vmatprep.subr.bf16.mxu0 0
  %535 = vmatpush1.bf16.msra.mxu0 %v495
  %536 = vmatprep.subr.bf16.mxu0 0
  %537 = vmatpush1.bf16.msra.mxu0 %v496
  %538 = vmatprep.subr.bf16.mxu0 0
  %539 = vmatpush1.bf16.msra.mxu0 %v497
  %540 = vmatprep.subr.bf16.mxu0 0
  %541 = vmatpush1.bf16.msra.mxu0 %v498
  %542 = vmatprep.subr.bf16.mxu0 0
  %543 = vmatpush1.bf16.msra.mxu0 %v499
  %544 = vmatprep.subr.bf16.mxu0 0
  %545 = vmatpush1.bf16.msra.mxu0 %v500
  %546 = vmatprep.subr.bf16.mxu0 0
  %547 = vmatpush1.bf16.msra.mxu0 %v501
  %548 = vmatprep.subr.bf16.mxu0 0
  %549 = vmatpush1.bf16.msra.mxu0 %v502
  %550 = vmatprep.subr.bf16.mxu0 0
  %551 = vmatpush1.bf16.msra.mxu0 %v503
  %552 = vmatprep.mubr.bf16.mxu0 %v384
  %553 = vmatmul.mubr.bf16.gmra.mrb[0].mxu0 %v383
  %v554 = vpop.f32.mrb[0].mxu0
  %v555 = vadd.f32 %v422, %v554
  %v556 = vpop.f32.mrb[0].mxu0
  %v557 = vpop.f32.mrb[0].mxu0
  %v558 = vpop.f32.mrb[0].mxu0
  %559 = vdwg.mxu0
  %v560 = vxor.u32 %v555, 2147483648
  %v561 = vmul.f32 %v560, 1.442695
  %v562 = vpow.pop %v561
  %v563 = vadd.f32 %v562, 1.0
  %v564 = vrcp.pop %v563
  %v565 = vmul.f32 1.0, %v564
  %vm566 = vcmp.lt.s32.totalorder %v293, 6
  %vm567 = vcmp.eq.s32.totalorder %v293, 6
  %v568 = vsel %vm567, %v311, 0.0
  %v569 = vsel %vm566, %v565, %v568
  %570 = vst.msk [vmem:[%s9] sm:$0xff] %vm53, %v569
  // Predicated region
  $region38: #{vae_forward.1} parent=0 // pred_check
    _
  $region39: #{vae_forward.1} parent=0 // pred_check_branch
    %572 = sbr.rel (0) target = $region41
  $region40: #{vae_forward.1} parent=0 // pred_region
    _
  $region41: #{vae_forward.1} parent=0 // pred_fallthru
    _
  // Predicated region
  $region42: #{vae_forward.1} parent=0 // pred_check
    _
  $region43: #{vae_forward.1} parent=0 // pred_check_branch
    %574 = sbr.rel (0) target = $region45
  $region44: #{vae_forward.1} parent=0 // pred_region
    _
  $region45: #{vae_forward.1} parent=0 // pred_fallthru
    _

</llo_original>
